<compile_context>
chip_gen: v7x
topology: tpu7x:2x2x1
jax: 0.10.0
libtpu: 0.0.40
codegen_flags: <defaults>
</compile_context>

<pallas_src>
import jax
import jax.numpy as jnp
from jax.experimental import pallas as pl
from jax.experimental.pallas import tpu as pltpu

# Problem sizes (small, consistent with the module's forward).
B, V, C, H, W, F = 2, 3, 4, 16, 16, 32
KH = KW = 3
HW = H * W
K = KH * KW * C            # im2col contraction size = 36
INV_HW = 1.0 / HW


# ----------------------------------------------------------------------------
# Fused kernel: backbone (im2col conv + bias + ReLU + global-avg-pool) for all
# V views of one batch element, then MVCNN mask + max over views.
# ----------------------------------------------------------------------------
def mvcnn_fused_kernel(pos_ref, p_ref, w_ref, b_ref, avg_ref, wxh_ref):
    """One grid step = one batch element.

    pos_ref : (B, V) int32 in SMEM (scalar prefetch)
    p_ref   : (1, K, V*H*W)  transposed im2col patches (K taps on sublanes)
    w_ref   : (F, K)         conv weight, transposed, K flattened as (c,kh,kw)
    b_ref   : (F, 1)         conv bias
    avg_ref : (1, F, 1)      masked max of global-avg-pooled features
    wxh_ref : (1, F, H*W)    masked max spatial feature map (NCHW-flat, lane-dense)
    """
    b = pl.program_id(0)

    # Backbone: one MXU matmul for all V views at once, then bias + ReLU (VPU).
    feat = jnp.dot(w_ref[...], p_ref[0],
                   preferred_element_type=jnp.float32)        # (F, V*H*W)
    feat = jnp.maximum(feat + b_ref[...], 0.0)

    acc_avg = None
    acc_wxh = None
    for v in range(V):                                         # static unroll, V=3
        # m = 1.0 iff this view is padding (pos == -1); scalar read from SMEM.
        m = jnp.where(pos_ref[b, v] == -1, jnp.float32(1.0), jnp.float32(0.0))
        f_v = feat[:, v * HW:(v + 1) * HW]                     # (F, H*W), 128-aligned slice
        a_v = jnp.sum(f_v, axis=1, keepdims=True) * INV_HW     # (F, 1) global avg pool
        # masked value: m*(-1) + (1-m)*value   (exact for m in {0,1})
        f_v = (1.0 - m) * f_v - m
        a_v = (1.0 - m) * a_v - m
        acc_wxh = f_v if acc_wxh is None else jnp.maximum(acc_wxh, f_v)
        acc_avg = a_v if acc_avg is None else jnp.maximum(acc_avg, a_v)

    avg_ref[0] = acc_avg                                       # (F, 1)
    wxh_ref[0] = acc_wxh                                       # (F, H*W), unmasked lane-dense stores


# ----------------------------------------------------------------------------
# Wrapper
# ----------------------------------------------------------------------------
def mvcnn_forward(img_bvchw, pos, wconv, bconv):
    """img_bvchw: (B, V, C, H, W); pos: (B, V) ints (== -1 marks padded views).

    Returns (avg_features [B, F], wxh_features [B, F, H, W]) like the module.
    """
    # ---- glue (plain JAX, fused by XLA): transposed im2col patch matrix ----
    # Transpose the RAW input only (cheap), so the 9x-amplified patch tensor is
    # built directly in the (B, K, V*H*W) layout the kernel wants.
    x = img_bvchw.transpose(0, 2, 1, 3, 4)                          # (B, C, V, H, W)
    xp = jnp.pad(x, ((0, 0), (0, 0), (0, 0), (1, 1), (1, 1)))       # "same" padding
    taps = [xp[:, :, :, kh:kh + H, kw:kw + W]
            for kh in range(KH) for kw in range(KW)]                # 9 x (B, C, V, H, W)
    pat = jnp.stack(taps, axis=2)                                   # (B, C, 9, V, H, W)
    patT = pat.reshape(B, K, V * HW)                                # K index = c*9 + kh*3 + kw
    wT = wconv.transpose(2, 0, 1, 3).reshape(K, F).T                # (F, K), matching K order
    b2 = bconv.reshape(F, 1)                                        # (F, 1)

    avg_out, wxh_out = pl.pallas_call(
        mvcnn_fused_kernel,
        out_shape=(jax.ShapeDtypeStruct((B, F, 1), jnp.float32),
                   jax.ShapeDtypeStruct((B, F, HW), jnp.float32)),
        grid_spec=pltpu.PrefetchScalarGridSpec(
            num_scalar_prefetch=1,
            grid=(B,),
            in_specs=[
                pl.BlockSpec((1, K, V * HW), lambda b, pos_sm: (b, 0, 0)),
                pl.BlockSpec((F, K), lambda b, pos_sm: (0, 0)),
                pl.BlockSpec((F, 1), lambda b, pos_sm: (0, 0)),
            ],
            out_specs=(
                pl.BlockSpec((1, F, 1), lambda b, pos_sm: (b, 0, 0)),
                pl.BlockSpec((1, F, HW), lambda b, pos_sm: (b, 0, 0)),
            ),
        ),
        compiler_params=pltpu.CompilerParams(
            dimension_semantics=("parallel",)),     # grid extent B=2 -> both v7x TCs
    )(pos.astype(jnp.int32), patT, wT, b2)

    avg_features = avg_out.reshape(B, F)
    wxh_features = wxh_out.reshape(B, F, H, W)      # already NCHW ordered
    return avg_features, wxh_features


# ----------------------------------------------------------------------------
# Pure-JAX reference (same synthetic backbone), for correctness checking.
# ----------------------------------------------------------------------------
def ref_forward(img_bvchw, pos, wconv, bconv):
    x = img_bvchw.reshape(B * V, C, H, W).transpose(0, 2, 3, 1)
    xp = jnp.pad(x, ((0, 0), (1, 1), (1, 1), (0, 0)))
    out = jnp.zeros((B * V, H, W, F), jnp.float32)
    for kh in range(KH):
        for kw in range(KW):
            out = out + jnp.einsum('nhwc,cf->nhwf',
                                   xp[:, kh:kh + H, kw:kw + W, :], wconv[kh, kw])
    out = jnp.maximum(out + bconv, 0.0)
    wxh = out.reshape(B, V, H, W, F)
    avg = out.mean(axis=(1, 2)).reshape(B, V, F)
    msk = (pos == -1).astype(jnp.float32)
    m_avg = msk[:, :, None]
    m_wxh = msk[:, :, None, None, None]
    avg = m_avg * (-1.0) + (1.0 - m_avg) * avg
    wxh = m_wxh * (-1.0) + (1.0 - m_wxh) * wxh
    avg_f = avg.max(axis=1)
    wxh_f = wxh.max(axis=1).transpose(0, 3, 1, 2)
    return avg_f, wxh_f


if __name__ == "__main__":
    key = jax.random.PRNGKey(0)
    k_img, k_w, k_b = jax.random.split(key, 3)

    # Deterministic synthetic backbone parameters.
    wconv = jax.random.normal(k_w, (KH, KW, C, F), jnp.float32) * 0.1
    bconv = jax.random.normal(k_b, (F,), jnp.float32) * 0.1

    # Inputs: multi-view images + positions (pos == -1 marks padded views).
    img = jax.random.normal(k_img, (B, V, C, H, W), jnp.float32)
    pos = jnp.array([[0, 1, -1],
                     [2, -1, -1]], dtype=jnp.int32)

    avg_features, wxh_features = jax.jit(mvcnn_forward)(img, pos, wconv, bconv)
    jax.block_until_ready((avg_features, wxh_features))

    avg_gold, wxh_gold = ref_forward(img, pos, wconv, bconv)
    assert avg_features.shape == (B, F)
    assert wxh_features.shape == (B, F, H, W)
    assert jnp.allclose(avg_features, avg_gold, atol=1e-3, rtol=1e-3)
    assert jnp.allclose(wxh_features, wxh_gold, atol=1e-3, rtol=1e-3)

    print("KERNEL_OK")
</pallas_src>

<mosaic_0001>
module attributes {stable_mosaic.version = 11 : i64} {
  func.func @mvcnn_fused_kernel(%arg0: i32, %arg1: memref<2x3xi32, #tpu.memory_space<smem>>, %arg2: memref<1x36x768xf32, #tpu.memory_space<vmem>>, %arg3: memref<32x36xf32, #tpu.memory_space<vmem>>, %arg4: memref<32x1xf32, #tpu.memory_space<vmem>>, %arg5: memref<1x32x1xf32, #tpu.memory_space<vmem>>, %arg6: memref<1x32x256xf32, #tpu.memory_space<vmem>>) attributes {dimension_semantics = [#tpu.dimension_semantics<parallel>], iteration_bounds = array<i64: 2>, scalar_prefetch = 1 : i64, scratch_operands = 0 : i64, tpu.core_type = #tpu.core_type<tc>, window_params = [{transform_indices = @transform_0, window_bounds = array<i64: 1, 36, 768>}, {pipeline_mode = #tpu.pipeline_mode<synchronous>, transform_indices = @transform_1, window_bounds = array<i64: 32, 36>}, {pipeline_mode = #tpu.pipeline_mode<synchronous>, transform_indices = @transform_2, window_bounds = array<i64: 32, 1>}, {transform_indices = @transform_3, window_bounds = array<i64: 1, 32, 1>}, {transform_indices = @transform_4, window_bounds = array<i64: 1, 32, 256>}]} {
    %c0 = arith.constant 0 : index
    %c0_0 = arith.constant 0 : index
    %0 = vector.load %arg3[%c0, %c0_0] : memref<32x36xf32, #tpu.memory_space<vmem>>, vector<32x36xf32>
    %c0_1 = arith.constant 0 : index
    %c0_2 = arith.constant 0 : index
    %c0_3 = arith.constant 0 : index
    %1 = vector.load %arg2[%c0_1, %c0_2, %c0_3] : memref<1x36x768xf32, #tpu.memory_space<vmem>>, vector<1x36x768xf32>
    %2 = vector.shape_cast %1 : vector<1x36x768xf32> to vector<36x768xf32>
    %cst = arith.constant dense<0.000000e+00> : vector<32x768xf32>
    %3 = tpu.matmul %0, %2, %cst {dimension_numbers = #tpu.dot_dimension_numbers<[1], [0], [0], [1], [0, 0, 1, 1], [], []>} : vector<32x36xf32>, vector<36x768xf32>, vector<32x768xf32> -> vector<32x768xf32>
    %c0_4 = arith.constant 0 : index
    %c0_5 = arith.constant 0 : index
    %4 = vector.load %arg4[%c0_4, %c0_5] : memref<32x1xf32, #tpu.memory_space<vmem>>, vector<32x1xf32>
    %5 = vector.broadcast %4 : vector<32x1xf32> to vector<32x768xf32>
    %6 = arith.addf %3, %5 : vector<32x768xf32>
    %cst_6 = arith.constant 0.000000e+00 : f32
    %7 = vector.broadcast %cst_6 : f32 to vector<32x768xf32>
    %8 = arith.maximumf %6, %7 : vector<32x768xf32>
    %9 = arith.index_cast %arg0 : i32 to index
    %c0_7 = arith.constant 0 : index
    %10 = memref.load %arg1[%9, %c0_7] : memref<2x3xi32, #tpu.memory_space<smem>>
    %c-1_i32 = arith.constant -1 : i32
    %11 = arith.cmpi eq, %10, %c-1_i32 : i32
    %cst_8 = arith.constant 1.000000e+00 : f32
    %cst_9 = arith.constant 0.000000e+00 : f32
    %12 = arith.select %11, %cst_8, %cst_9 : f32
    %13 = vector.extract_strided_slice %8 {offsets = [0, 0], sizes = [32, 256], strides = [1, 1]} : vector<32x768xf32> to vector<32x256xf32>
    %cst_10 = arith.constant dense<0.000000e+00> : vector<32xf32>
    %14 = vector.multi_reduction <add>, %13, %cst_10 [1] : vector<32x256xf32> to vector<32xf32>
    %15 = vector.shape_cast %14 : vector<32xf32> to vector<32x1xf32>
    %cst_11 = arith.constant 3.906250e-03 : f32
    %16 = vector.broadcast %cst_11 : f32 to vector<32x1xf32>
    %17 = arith.mulf %15, %16 : vector<32x1xf32>
    %cst_12 = arith.constant 1.000000e+00 : f32
    %18 = arith.subf %cst_12, %12 : f32
    %19 = vector.broadcast %18 : f32 to vector<32x256xf32>
    %20 = arith.mulf %19, %13 : vector<32x256xf32>
    %21 = vector.broadcast %12 : f32 to vector<32x256xf32>
    %22 = arith.subf %20, %21 : vector<32x256xf32>
    %cst_13 = arith.constant 1.000000e+00 : f32
    %23 = arith.subf %cst_13, %12 : f32
    %24 = vector.broadcast %23 : f32 to vector<32x1xf32>
    %25 = arith.mulf %24, %17 : vector<32x1xf32>
    %26 = vector.broadcast %12 : f32 to vector<32x1xf32>
    %27 = arith.subf %25, %26 : vector<32x1xf32>
    %28 = arith.index_cast %arg0 : i32 to index
    %c1 = arith.constant 1 : index
    %29 = memref.load %arg1[%28, %c1] : memref<2x3xi32, #tpu.memory_space<smem>>
    %c-1_i32_14 = arith.constant -1 : i32
    %30 = arith.cmpi eq, %29, %c-1_i32_14 : i32
    %cst_15 = arith.constant 1.000000e+00 : f32
    %cst_16 = arith.constant 0.000000e+00 : f32
    %31 = arith.select %30, %cst_15, %cst_16 : f32
    %32 = vector.extract_strided_slice %8 {offsets = [0, 256], sizes = [32, 256], strides = [1, 1]} : vector<32x768xf32> to vector<32x256xf32>
    %cst_17 = arith.constant dense<0.000000e+00> : vector<32xf32>
    %33 = vector.multi_reduction <add>, %32, %cst_17 [1] : vector<32x256xf32> to vector<32xf32>
    %34 = vector.shape_cast %33 : vector<32xf32> to vector<32x1xf32>
    %cst_18 = arith.constant 3.906250e-03 : f32
    %35 = vector.broadcast %cst_18 : f32 to vector<32x1xf32>
    %36 = arith.mulf %34, %35 : vector<32x1xf32>
    %cst_19 = arith.constant 1.000000e+00 : f32
    %37 = arith.subf %cst_19, %31 : f32
    %38 = vector.broadcast %37 : f32 to vector<32x256xf32>
    %39 = arith.mulf %38, %32 : vector<32x256xf32>
    %40 = vector.broadcast %31 : f32 to vector<32x256xf32>
    %41 = arith.subf %39, %40 : vector<32x256xf32>
    %cst_20 = arith.constant 1.000000e+00 : f32
    %42 = arith.subf %cst_20, %31 : f32
    %43 = vector.broadcast %42 : f32 to vector<32x1xf32>
    %44 = arith.mulf %43, %36 : vector<32x1xf32>
    %45 = vector.broadcast %31 : f32 to vector<32x1xf32>
    %46 = arith.subf %44, %45 : vector<32x1xf32>
    %47 = arith.maximumf %22, %41 : vector<32x256xf32>
    %48 = arith.maximumf %27, %46 : vector<32x1xf32>
    %49 = arith.index_cast %arg0 : i32 to index
    %c2 = arith.constant 2 : index
    %50 = memref.load %arg1[%49, %c2] : memref<2x3xi32, #tpu.memory_space<smem>>
    %c-1_i32_21 = arith.constant -1 : i32
    %51 = arith.cmpi eq, %50, %c-1_i32_21 : i32
    %cst_22 = arith.constant 1.000000e+00 : f32
    %cst_23 = arith.constant 0.000000e+00 : f32
    %52 = arith.select %51, %cst_22, %cst_23 : f32
    %53 = vector.extract_strided_slice %8 {offsets = [0, 512], sizes = [32, 256], strides = [1, 1]} : vector<32x768xf32> to vector<32x256xf32>
    %cst_24 = arith.constant dense<0.000000e+00> : vector<32xf32>
    %54 = vector.multi_reduction <add>, %53, %cst_24 [1] : vector<32x256xf32> to vector<32xf32>
    %55 = vector.shape_cast %54 : vector<32xf32> to vector<32x1xf32>
    %cst_25 = arith.constant 3.906250e-03 : f32
    %56 = vector.broadcast %cst_25 : f32 to vector<32x1xf32>
    %57 = arith.mulf %55, %56 : vector<32x1xf32>
    %cst_26 = arith.constant 1.000000e+00 : f32
    %58 = arith.subf %cst_26, %52 : f32
    %59 = vector.broadcast %58 : f32 to vector<32x256xf32>
    %60 = arith.mulf %59, %53 : vector<32x256xf32>
    %61 = vector.broadcast %52 : f32 to vector<32x256xf32>
    %62 = arith.subf %60, %61 : vector<32x256xf32>
    %cst_27 = arith.constant 1.000000e+00 : f32
    %63 = arith.subf %cst_27, %52 : f32
    %64 = vector.broadcast %63 : f32 to vector<32x1xf32>
    %65 = arith.mulf %64, %57 : vector<32x1xf32>
    %66 = vector.broadcast %52 : f32 to vector<32x1xf32>
    %67 = arith.subf %65, %66 : vector<32x1xf32>
    %68 = arith.maximumf %47, %62 : vector<32x256xf32>
    %69 = arith.maximumf %48, %67 : vector<32x1xf32>
    %c0_28 = arith.constant 0 : index
    %c0_29 = arith.constant 0 : index
    %c0_30 = arith.constant 0 : index
    %70 = vector.load %arg5[%c0_28, %c0_29, %c0_30] : memref<1x32x1xf32, #tpu.memory_space<vmem>>, vector<1x32x1xf32>
    %71 = vector.shape_cast %70 : vector<1x32x1xf32> to vector<32x1xf32>
    %72 = vector.shape_cast %69 : vector<32x1xf32> to vector<1x32x1xf32>
    tpu.vector_store %arg5[%c0_28, %c0_29, %c0_30], %72 {strides = array<i32>} : memref<1x32x1xf32, #tpu.memory_space<vmem>>, vector<1x32x1xf32>,
    %c0_31 = arith.constant 0 : index
    %c0_32 = arith.constant 0 : index
    %c0_33 = arith.constant 0 : index
    %73 = vector.load %arg6[%c0_31, %c0_32, %c0_33] : memref<1x32x256xf32, #tpu.memory_space<vmem>>, vector<1x32x256xf32>
    %74 = vector.shape_cast %73 : vector<1x32x256xf32> to vector<32x256xf32>
    %75 = vector.shape_cast %68 : vector<32x256xf32> to vector<1x32x256xf32>
    tpu.vector_store %arg6[%c0_31, %c0_32, %c0_33], %75 {strides = array<i32>} : memref<1x32x256xf32, #tpu.memory_space<vmem>>, vector<1x32x256xf32>,
    return
  }
  func.func @transform_0(%arg0: i32, %arg1: memref<2x3xi32, #tpu.memory_space<smem>>) -> (i32, i32, i32) {
    %c0_i32 = arith.constant 0 : i32
    %c0_i32_0 = arith.constant 0 : i32
    %c0_i32_1 = arith.constant 0 : i32
    return %arg0, %c0_i32, %c0_i32_0 : i32, i32, i32
  }
  func.func @transform_1(%arg0: i32, %arg1: memref<2x3xi32, #tpu.memory_space<smem>>) -> (i32, i32) {
    %c0_i32 = arith.constant 0 : i32
    %c0_i32_0 = arith.constant 0 : i32
    %c0_i32_1 = arith.constant 0 : i32
    return %c0_i32, %c0_i32_0 : i32, i32
  }
  func.func @transform_2(%arg0: i32, %arg1: memref<2x3xi32, #tpu.memory_space<smem>>) -> (i32, i32) {
    %c0_i32 = arith.constant 0 : i32
    %c0_i32_0 = arith.constant 0 : i32
    %c0_i32_1 = arith.constant 0 : i32
    return %c0_i32, %c0_i32_0 : i32, i32
  }
  func.func @transform_3(%arg0: i32, %arg1: memref<2x3xi32, #tpu.memory_space<smem>>) -> (i32, i32, i32) {
    %c0_i32 = arith.constant 0 : i32
    %c0_i32_0 = arith.constant 0 : i32
    %c0_i32_1 = arith.constant 0 : i32
    return %arg0, %c0_i32, %c0_i32_0 : i32, i32, i32
  }
  func.func @transform_4(%arg0: i32, %arg1: memref<2x3xi32, #tpu.memory_space<smem>>) -> (i32, i32, i32) {
    %c0_i32 = arith.constant 0 : i32
    %c0_i32_0 = arith.constant 0 : i32
    %c0_i32_1 = arith.constant 0 : i32
    return %arg0, %c0_i32, %c0_i32_0 : i32, i32, i32
  }
}

</mosaic_0001>

<llo_original>
// kernel: mvcnn_forward.1
$region0: #{mvcnn_forward.1}
  #allocation0 [shape = 'u32[]', space=smem, size = 0x4, offset = 0x4, fixed_abs, tag = 'smem constant byte address 0x4 - core index']
  #allocation1 [shape = 'u32[144,128]{1,0:T(1,128)}', space=vmem, size = 0x12000, scoped, tag = 'internal scratch']
  #allocation2 [shape = 's32[1]{0}', space=sflag, size = 0x4, scoped, tag = 'scoped memory for mvcnn_forward.1']
  #allocation3 [shape = 'u8[1024]{0}', space=smem, size = 0x400, scoped, tag = 'prefetched SMEM operand 0']
  %s0 = inlined_call_operand.vmem [shape: s32[2,3], index: 0, kind: input, shape index: {}]
  %s1 = inlined_call_operand.vmem [shape: f32[2,36,768], index: 1, kind: input, shape index: {}]
  %s2 = inlined_call_operand.vmem [shape: f32[32,36], index: 2, kind: input, shape index: {}]
  %s3 = inlined_call_operand.vmem [shape: f32[32,1], index: 3, kind: input, shape index: {}]
  %s4 = inlined_call_operand.vmem [shape: f32[2,32,1], index: 4, kind: output, shape index: {0}]
  %s5 = inlined_call_operand.vmem [shape: f32[2,32,256], index: 5, kind: output, shape index: {1}]
  %6 = xla_tuple %s4, %s5
  %s7 = sld [smem:[#allocation0]]
  $region53: #{mvcnn_forward.1} parent=0
    _
  %s9 = ssub.s32 1, %s7
  %s10 = scalar_select 0, %s9, %s7
  %s11 = sshll.u32 %s0, 4
  %s12 = int_to_ptr.vmem [resolvable:$true] %s11
  %14 = dma.vmem_to_smem %s12, 32, [#allocation3], [#allocation2]
  %15 = dma.done [#allocation2], 32
  %16 = sfence
  loop: start=0, step=1, limit=4
  $region2: #{mvcnn_forward.1} parent=0 // loop_pre_header
    _
  $region3: #{mvcnn_forward.1} parent=0 // loop_header
    %s18 = sphi 0, %s22
    %p19 = scmp.ge.s32.totalorder %s18, 4
    %s28 = sphi 0, %s30
    %s31 = sphi 0, %s28
    %s32 = sphi 0, %s31
    %s48 = sphi 0, %s32
    %s52 = sphi 0, %s52
    %s54 = sphi 0, %s52
    %s55 = sphi 0, %s54
    %s69 = sphi 0, %s55
    %s73 = sphi 0, %s73
    %s75 = sphi 0, %s73
    %s76 = sphi 0, %s75
    %s90 = sphi 0, %s76
    %s96 = sphi 0, %s98
    %s99 = sphi 0, %s96
    %s100 = sphi 0, %s99
    %s116 = sphi 0, %s100
    %s122 = sphi 0, %s124
    %s125 = sphi 0, %s122
    %s126 = sphi 0, %s125
    %s142 = sphi 0, %s126
  $region4: #{mvcnn_forward.1} parent=0 // loop_header_branch
    %21 = sbr.rel (%p19) target = $region8
  $region5: #{mvcnn_forward.1} parent=0 // loop_body
    %s23 = ssub.s32 %s18, 1
    %s24 = ssub.s32 %s18, 2
    %s25 = sadd.s32 %s18, 1
    %s26 = ssub.s32 %s18, %s25
    %p27 = scmp.eq.s32.totalorder %s26, 0
    %s29 = sadd.s32 %s28, 1
    %s30 = scalar_select %p27, %s28, %s29
    %p33 = pneg %p27
    %p34 = scmp.eq.s32.totalorder %s18, 1
    %p35 = por %p33, %p34
    %p36 = scmp.ne.s32.totalorder %s28, %s31
    %p37 = scmp.eq.s32.totalorder %s18, 0
    %p38 = por %p36, %p37
    %p39 = scmp.ne.s32.totalorder %s28, %s31
    %p40 = scmp.eq.s32.totalorder %s23, 1
    %p41 = por %p39, %p40
    %p42 = scmp.ne.s32.totalorder %s31, %s32
    %p43 = scmp.eq.s32.totalorder %s23, 0
    %p44 = por %p42, %p43
    %p45 = scmp.ne.s32.totalorder %s31, %s32
    %p46 = scmp.eq.s32.totalorder %s24, 1
    %p47 = por %p45, %p46
    %p49 = scmp.ne.s32.totalorder %s32, %s48
    %p50 = scmp.eq.s32.totalorder %s24, 0
    %p51 = por %p49, %p50
    %s53 = sadd.s32 %s52, 1
    %p56 = scmp.eq.s32.totalorder %s18, 1
    %p57 = scmp.ne.s32.totalorder %s52, %s54
    %p58 = scmp.eq.s32.totalorder %s18, 0
    %p59 = por %p57, %p58
    %p60 = scmp.ne.s32.totalorder %s52, %s54
    %p61 = scmp.eq.s32.totalorder %s23, 1
    %p62 = por %p60, %p61
    %p63 = scmp.ne.s32.totalorder %s54, %s55
    %p64 = scmp.eq.s32.totalorder %s23, 0
    %p65 = por %p63, %p64
    %p66 = scmp.ne.s32.totalorder %s54, %s55
    %p67 = scmp.eq.s32.totalorder %s24, 1
    %p68 = por %p66, %p67
    %p70 = scmp.ne.s32.totalorder %s55, %s69
    %p71 = scmp.eq.s32.totalorder %s24, 0
    %p72 = por %p70, %p71
    %s74 = sadd.s32 %s73, 1
    %p77 = scmp.eq.s32.totalorder %s18, 1
    %p78 = scmp.ne.s32.totalorder %s73, %s75
    %p79 = scmp.eq.s32.totalorder %s18, 0
    %p80 = por %p78, %p79
    %p81 = scmp.ne.s32.totalorder %s73, %s75
    %p82 = scmp.eq.s32.totalorder %s23, 1
    %p83 = por %p81, %p82
    %p84 = scmp.ne.s32.totalorder %s75, %s76
    %p85 = scmp.eq.s32.totalorder %s23, 0
    %p86 = por %p84, %p85
    %p87 = scmp.ne.s32.totalorder %s75, %s76
    %p88 = scmp.eq.s32.totalorder %s24, 1
    %p89 = por %p87, %p88
    %p91 = scmp.ne.s32.totalorder %s76, %s90
    %p92 = scmp.eq.s32.totalorder %s24, 0
    %p93 = por %p91, %p92
    %s94 = ssub.s32 %s18, %s25
    %p95 = scmp.eq.s32.totalorder %s94, 0
    %s97 = sadd.s32 %s96, 1
    %s98 = scalar_select %p95, %s96, %s97
    %p101 = pneg %p95
    %p102 = scmp.eq.s32.totalorder %s18, 1
    %p103 = por %p101, %p102
    %p104 = scmp.ne.s32.totalorder %s96, %s99
    %p105 = scmp.eq.s32.totalorder %s18, 0
    %p106 = por %p104, %p105
    %p107 = scmp.ne.s32.totalorder %s96, %s99
    %p108 = scmp.eq.s32.totalorder %s23, 1
    %p109 = por %p107, %p108
    %p110 = scmp.ne.s32.totalorder %s99, %s100
    %p111 = scmp.eq.s32.totalorder %s23, 0
    %p112 = por %p110, %p111
    %p113 = scmp.ne.s32.totalorder %s99, %s100
    %p114 = scmp.eq.s32.totalorder %s24, 1
    %p115 = por %p113, %p114
    %p117 = scmp.ne.s32.totalorder %s100, %s116
    %p118 = scmp.eq.s32.totalorder %s24, 0
    %p119 = por %p117, %p118
    %s120 = ssub.s32 %s18, %s25
    %p121 = scmp.eq.s32.totalorder %s120, 0
    %s123 = sadd.s32 %s122, 1
    %s124 = scalar_select %p121, %s122, %s123
    %p127 = pneg %p121
    %p128 = scmp.eq.s32.totalorder %s18, 1
    %p129 = por %p127, %p128
    %p130 = scmp.ne.s32.totalorder %s122, %s125
    %p131 = scmp.eq.s32.totalorder %s18, 0
    %p132 = por %p130, %p131
    %p133 = scmp.ne.s32.totalorder %s122, %s125
    %p134 = scmp.eq.s32.totalorder %s23, 1
    %p135 = por %p133, %p134
    %p136 = scmp.ne.s32.totalorder %s125, %s126
    %p137 = scmp.eq.s32.totalorder %s23, 0
    %p138 = por %p136, %p137
    %p139 = scmp.ne.s32.totalorder %s125, %s126
    %p140 = scmp.eq.s32.totalorder %s24, 1
    %p141 = por %p139, %p140
    %p143 = scmp.ne.s32.totalorder %s126, %s142
    %p144 = scmp.eq.s32.totalorder %s24, 0
    %p145 = por %p143, %p144
    %p146 = scmp.le.s32.totalorder 1, %s18
    %p147 = scmp.lt.s32.totalorder %s18, 3
    %p148 = pnand %p146, %p147
    %p149 = pneg %p148
    // Predicated region
    $region9: #{mvcnn_forward.1} parent=5 // pred_check
      _
    $region10: #{mvcnn_forward.1} parent=5 // pred_check_branch
      %151 = sbr.rel (%p148) target = $region12
    $region11: #{mvcnn_forward.1} parent=5 // pred_region
      %s152 = ssub.s32 %s18, 1
      // Predicated region
      $region13: #{mvcnn_forward.1} parent=11 // pred_check
        %p153 = pneg %p65
      $region14: #{mvcnn_forward.1} parent=11 // pred_check_branch
        %155 = sbr.rel (%p153) target = $region16
      $region15: #{mvcnn_forward.1} parent=11 // pred_region
        _
      $region16: #{mvcnn_forward.1} parent=11 // pred_fallthru
        _
      // Predicated region
      $region17: #{mvcnn_forward.1} parent=11 // pred_check
        %p156 = pneg %p86
      $region18: #{mvcnn_forward.1} parent=11 // pred_check_branch
        %158 = sbr.rel (%p156) target = $region20
      $region19: #{mvcnn_forward.1} parent=11 // pred_region
        _
      $region20: #{mvcnn_forward.1} parent=11 // pred_fallthru
        _
    $region12: #{mvcnn_forward.1} parent=5 // pred_fallthru
      _
    %p159 = scmp.lt.s32.totalorder %s18, 2
    // Predicated region
    $region21: #{mvcnn_forward.1} parent=5 // pred_check
      %p160 = pneg %p159
    $region22: #{mvcnn_forward.1} parent=5 // pred_check_branch
      %162 = sbr.rel (%p160) target = $region24
    $region23: #{mvcnn_forward.1} parent=5 // pred_region
      // Predicated region
      $region25: #{mvcnn_forward.1} parent=23 // pred_check
        %p163 = pneg %p38
      $region26: #{mvcnn_forward.1} parent=23 // pred_check_branch
        %165 = sbr.rel (%p163) target = $region28
      $region27: #{mvcnn_forward.1} parent=23 // pred_region
        %p166 = scmp.lt.s32.totalorder %s18, 1
        %s167 = scalar_select %p166, %s18, 1
        %s168 = smul.addr %s167, 30
        %s169 = smul.addr %s168, 8
        %s170 = scalar_lea.vmem %s1, %s169
      $region28: #{mvcnn_forward.1} parent=23 // pred_fallthru
        _
    $region24: #{mvcnn_forward.1} parent=5 // pred_fallthru
      _
    %p171 = scmp.le.s32.totalorder 1, %s18
    %p172 = scmp.lt.s32.totalorder %s18, 3
    %p173 = pnand %p171, %p172
    %p174 = pneg %p173
    // Predicated region
    $region29: #{mvcnn_forward.1} parent=5 // pred_check
      _
    $region30: #{mvcnn_forward.1} parent=5 // pred_check_branch
      %176 = sbr.rel (%p173) target = $region32
    $region31: #{mvcnn_forward.1} parent=5 // pred_region
      %s177 = ssub.s32 %s18, 1
      %p178 = scmp.lt.s32.totalorder %s23, 1
      %s179 = scalar_select %p178, %s23, 1
      %s180 = smul.addr %s179, 30
      %s181 = smul.addr %s180, 8
      %s182 = scalar_lea.vmem %s1, %s181
      %p183 = pneg %p44
      %p184 = pneg %p41
      %p185 = pneg %p65
      %p186 = pneg %p62
      %p187 = pneg %p86
      %p188 = pneg %p83
      %p189 = pneg %p112
      %p190 = pneg %p109
      %p191 = scmp.lt.s32.totalorder %s23, 1
      %s192 = scalar_select %p191, %s23, 1
      %s193 = smul.addr %s192, 4
      %s194 = smul.addr %s193, 8
      %s195 = scalar_lea.vmem %s4, %s194
      %p196 = pneg %p138
      %p197 = pneg %p135
      %p198 = scmp.lt.s32.totalorder %s23, 1
      %s199 = scalar_select %p198, %s23, 1
      %s200 = smul.addr %s199, 8
      %s201 = smul.addr %s200, 8
      %s202 = scalar_lea.vmem %s5, %s201
      %p203 = scmp.lt.s32.totalorder %s23, 1
      %s204 = scalar_select %p203, %s23, 1
      %s205 = smul.addr %s204, 30
      %s206 = smul.addr %s205, 8
      %s207 = scalar_lea.vmem %s1, %s206
      %p208 = scmp.lt.s32.totalorder %s23, 1
      %s209 = scalar_select %p208, %s23, 1
      %s210 = smul.addr %s209, 4
      %s211 = smul.addr %s210, 8
      %s212 = scalar_lea.vmem %s4, %s211
      %p213 = scmp.lt.s32.totalorder %s23, 1
      %s214 = scalar_select %p213, %s23, 1
      %s215 = smul.addr %s214, 8
      %s216 = smul.addr %s215, 8
      %s217 = scalar_lea.vmem %s5, %s216
      %v218 = vld [vmem:[%s2] sm:$0xff]
      %v219 = vld [vmem:[%s2 + $0x8] sm:$0xff]
      %v220 = vld [vmem:[%s2 + $0x10] sm:$0xff]
      %v221 = vld [vmem:[%s2 + $0x18] sm:$0xff]
      %v222 = vld [vmem:[%s207] sm:$0xff]
      %v223 = vld [vmem:[%s207 + $0x8] sm:$0xff]
      %v224 = vld [vmem:[%s207 + $0x10] sm:$0xff]
      %v225 = vld [vmem:[%s207 + $0x18] sm:$0xff]
      %v226 = vld [vmem:[%s207 + $0x20] sm:$0xff]
      %v227 = vld [vmem:[%s207 + $0x28] sm:$0xff]
      %v228 = vld [vmem:[%s207 + $0x30] sm:$0xff]
      %v229 = vld [vmem:[%s207 + $0x38] sm:$0xff]
      %v230 = vld [vmem:[%s207 + $0x40] sm:$0xff]
      %v231 = vld [vmem:[%s207 + $0x48] sm:$0xff]
      %v232 = vld [vmem:[%s207 + $0x50] sm:$0xff]
      %v233 = vld [vmem:[%s207 + $0x58] sm:$0xff]
      %v234 = vld [vmem:[%s207 + $0x60] sm:$0xff]
      %v235 = vld [vmem:[%s207 + $0x68] sm:$0xff]
      %v236 = vld [vmem:[%s207 + $0x70] sm:$0xff]
      %v237 = vld [vmem:[%s207 + $0x78] sm:$0xff]
      %v238 = vld [vmem:[%s207 + $0x80] sm:$0xff]
      %v239 = vld [vmem:[%s207 + $0x88] sm:$0xff]
      %v240 = vld [vmem:[%s207 + $0x90] sm:$0xff]
      %v241 = vld [vmem:[%s207 + $0x98] sm:$0xff]
      %v242 = vld [vmem:[%s207 + $0xa0] sm:$0xff]
      %v243 = vld [vmem:[%s207 + $0xa8] sm:$0xff]
      %v244 = vld [vmem:[%s207 + $0xb0] sm:$0xff]
      %v245 = vld [vmem:[%s207 + $0xb8] sm:$0xff]
      %v246 = vld [vmem:[%s207 + $0xc0] sm:$0xf]
      %v247 = vld [vmem:[%s207 + $0xc8] sm:$0xf]
      %v248 = vld [vmem:[%s207 + $0xd0] sm:$0xf]
      %v249 = vld [vmem:[%s207 + $0xd8] sm:$0xf]
      %v250 = vld [vmem:[%s207 + $0xe0] sm:$0xf]
      %v251 = vld [vmem:[%s207 + $0xe8] sm:$0xf]
      %v252 = vld [vmem:[%s3] sm:$0xff]
      %v253 = vld [vmem:[%s3 + $0x8] sm:$0xff]
      %v254 = vld [vmem:[%s3 + $0x10] sm:$0xff]
      %v255 = vld [vmem:[%s3 + $0x18] sm:$0xff]
      %257 = vset.pattern.permute.xlu0 0
      %258 = vperm.xlu0 %257, %v252
      %v259 = vpop.permute.xlu0 %258
      %262 = vset.pattern.permute.xlu0 0
      %263 = vperm.xlu0 %262, %v253
      %v264 = vpop.permute.xlu0 %263
      %267 = vset.pattern.permute.xlu0 0
      %268 = vperm.xlu0 %267, %v254
      %v269 = vpop.permute.xlu0 %268
      %272 = vset.pattern.permute.xlu0 0
      %273 = vperm.xlu0 %272, %v255
      %v274 = vpop.permute.xlu0 %273
      %vm276 = vcmask 293888
      %v278 = vsel %vm276, %v218, 0
      %v281 = vsel %vm276, %v219, 0
      %v284 = vsel %vm276, %v220, 0
      %v287 = vsel %vm276, %v221, 0
      %vm289 = vcmask 1043456
      %v291 = vsel %vm289, %v246, 0
      %v294 = vsel %vm289, %v247, 0
      %v297 = vsel %vm289, %v248, 0
      %v300 = vsel %vm289, %v249, 0
      %v303 = vsel %vm289, %v250, 0
      %v306 = vsel %vm289, %v251, 0
      %308 = vmatprep.subr.mxu0 %v223
      %309 = vmatpush1.msra.mxu0 %v222
      %310 = vmatprep.subr.mxu0 %v229
      %311 = vmatpush1.msra.mxu0 %v228
      %312 = vmatprep.subr.mxu0 %v235
      %313 = vmatpush1.msra.mxu0 %v234
      %314 = vmatprep.subr.mxu0 %v241
      %315 = vmatpush1.msra.mxu0 %v240
      %316 = vmatprep.subr.mxu0 %v294
      %317 = vmatpush1.msra.mxu0 %v291
      %318 = vmatprep.subr.mxu0 0.0
      %319 = vmatpush1.msra.mxu0 0.0
      %320 = vmatprep.subr.mxu0 0.0
      %321 = vmatpush1.msra.mxu0 0.0
      %322 = vmatprep.subr.mxu0 0.0
      %323 = vmatpush1.msra.mxu0 0.0
      %324 = vmatprep.subr.mxu0 0.0
      %325 = vmatpush1.msra.mxu0 0.0
      %326 = vmatprep.subr.mxu0 0.0
      %327 = vmatpush1.msra.mxu0 0.0
      %328 = vmatprep.subr.mxu0 0.0
      %329 = vmatpush1.msra.mxu0 0.0
      %330 = vmatprep.subr.mxu0 0.0
      %331 = vmatpush1.msra.mxu0 0.0
      %332 = vmatprep.subr.mxu0 0.0
      %333 = vmatpush1.msra.mxu0 0.0
      %334 = vmatprep.subr.mxu0 0.0
      %335 = vmatpush1.msra.mxu0 0.0
      %336 = vmatprep.subr.mxu0 0.0
      %337 = vmatpush1.msra.mxu0 0.0
      %338 = vmatprep.subr.mxu0 0.0
      %339 = vmatpush1.msra.mxu0 0.0
      %340 = vmatprep.subr.mxu0 0.0
      %341 = vmatpush1.msra.mxu0 0.0
      %342 = vmatprep.subr.mxu0 0.0
      %343 = vmatpush1.msra.mxu0 0.0
      %344 = vmatprep.subr.mxu0 0.0
      %345 = vmatpush1.msra.mxu0 0.0
      %346 = vmatprep.subr.mxu0 0.0
      %347 = vmatpush1.msra.mxu0 0.0
      %348 = vmatprep.subr.mxu0 0.0
      %349 = vmatpush1.msra.mxu0 0.0
      %350 = vmatprep.subr.mxu0 0.0
      %351 = vmatpush1.msra.mxu0 0.0
      %352 = vmatprep.subr.mxu0 0.0
      %353 = vmatpush1.msra.mxu0 0.0
      %354 = vmatprep.subr.mxu0 0.0
      %355 = vmatpush1.msra.mxu0 0.0
      %356 = vmatprep.subr.mxu0 0.0
      %357 = vmatpush1.msra.mxu0 0.0
      %358 = vmatprep.subr.mxu0 0.0
      %359 = vmatpush1.msra.mxu0 0.0
      %360 = vmatprep.subr.mxu0 0.0
      %361 = vmatpush1.msra.mxu0 0.0
      %362 = vmatprep.subr.mxu0 0.0
      %363 = vmatpush1.msra.mxu0 0.0
      %364 = vmatprep.subr.mxu0 0.0
      %365 = vmatpush1.msra.mxu0 0.0
      %366 = vmatprep.subr.mxu0 0.0
      %367 = vmatpush1.msra.mxu0 0.0
      %368 = vmatprep.subr.mxu0 0.0
      %369 = vmatpush1.msra.mxu0 0.0
      %370 = vmatprep.subr.mxu0 0.0
      %371 = vmatpush1.msra.mxu0 0.0
      %372 = vmatprep.mubr.f32.mxu0 0.0
      %373 = vmatmul.mubr.f32.gmra.mrb[0].mxu0 %v278
      %v374 = vpop.f32.mrb[0].mxu0
      %v375 = vadd.f32 %v259, %v374
      %v376 = vpop.f32.mrb[0].mxu0
      %v377 = vadd.f32 %v259, %v376
      %378 = vmatprep.mubr.f32.mxu0 0.0
      %379 = vmatmul.mubr.f32.gmra.mrb[0].mxu0 %v281
      %v380 = vpop.f32.mrb[0].mxu0
      %v381 = vadd.f32 %v264, %v380
      %v382 = vpop.f32.mrb[0].mxu0
      %v383 = vadd.f32 %v264, %v382
      %384 = vmatprep.mubr.f32.mxu0 0.0
      %385 = vmatmul.mubr.f32.gmra.mrb[0].mxu0 %v284
      %v386 = vpop.f32.mrb[0].mxu0
      %v387 = vadd.f32 %v269, %v386
      %v388 = vpop.f32.mrb[0].mxu0
      %v389 = vadd.f32 %v269, %v388
      %390 = vmatprep.mubr.f32.mxu0 0.0
      %391 = vmatmul.mubr.f32.gmra.mrb[0].mxu0 %v287
      %v392 = vpop.f32.mrb[0].mxu0
      %v393 = vadd.f32 %v274, %v392
      %v394 = vpop.f32.mrb[0].mxu0
      %v395 = vadd.f32 %v274, %v394
      %396 = vdwg.mxu0
      %397 = vmatprep.subr.mxu0 %v225
      %398 = vmatpush1.msra.mxu0 %v224
      %399 = vmatprep.subr.mxu0 %v231
      %400 = vmatpush1.msra.mxu0 %v230
      %401 = vmatprep.subr.mxu0 %v237
      %402 = vmatpush1.msra.mxu0 %v236
      %403 = vmatprep.subr.mxu0 %v243
      %404 = vmatpush1.msra.mxu0 %v242
      %405 = vmatprep.subr.mxu0 %v300
      %406 = vmatpush1.msra.mxu0 %v297
      %407 = vmatprep.subr.mxu0 0.0
      %408 = vmatpush1.msra.mxu0 0.0
      %409 = vmatprep.subr.mxu0 0.0
      %410 = vmatpush1.msra.mxu0 0.0
      %411 = vmatprep.subr.mxu0 0.0
      %412 = vmatpush1.msra.mxu0 0.0
      %413 = vmatprep.subr.mxu0 0.0
      %414 = vmatpush1.msra.mxu0 0.0
      %415 = vmatprep.subr.mxu0 0.0
      %416 = vmatpush1.msra.mxu0 0.0
      %417 = vmatprep.subr.mxu0 0.0
      %418 = vmatpush1.msra.mxu0 0.0
      %419 = vmatprep.subr.mxu0 0.0
      %420 = vmatpush1.msra.mxu0 0.0
      %421 = vmatprep.subr.mxu0 0.0
      %422 = vmatpush1.msra.mxu0 0.0
      %423 = vmatprep.subr.mxu0 0.0
      %424 = vmatpush1.msra.mxu0 0.0
      %425 = vmatprep.subr.mxu0 0.0
      %426 = vmatpush1.msra.mxu0 0.0
      %427 = vmatprep.subr.mxu0 0.0
      %428 = vmatpush1.msra.mxu0 0.0
      %429 = vmatprep.subr.mxu0 0.0
      %430 = vmatpush1.msra.mxu0 0.0
      %431 = vmatprep.subr.mxu0 0.0
      %432 = vmatpush1.msra.mxu0 0.0
      %433 = vmatprep.subr.mxu0 0.0
      %434 = vmatpush1.msra.mxu0 0.0
      %435 = vmatprep.subr.mxu0 0.0
      %436 = vmatpush1.msra.mxu0 0.0
      %437 = vmatprep.subr.mxu0 0.0
      %438 = vmatpush1.msra.mxu0 0.0
      %439 = vmatprep.subr.mxu0 0.0
      %440 = vmatpush1.msra.mxu0 0.0
      %441 = vmatprep.subr.mxu0 0.0
      %442 = vmatpush1.msra.mxu0 0.0
      %443 = vmatprep.subr.mxu0 0.0
      %444 = vmatpush1.msra.mxu0 0.0
      %445 = vmatprep.subr.mxu0 0.0
      %446 = vmatpush1.msra.mxu0 0.0
      %447 = vmatprep.subr.mxu0 0.0
      %448 = vmatpush1.msra.mxu0 0.0
      %449 = vmatprep.subr.mxu0 0.0
      %450 = vmatpush1.msra.mxu0 0.0
      %451 = vmatprep.subr.mxu0 0.0
      %452 = vmatpush1.msra.mxu0 0.0
      %453 = vmatprep.subr.mxu0 0.0
      %454 = vmatpush1.msra.mxu0 0.0
      %455 = vmatprep.subr.mxu0 0.0
      %456 = vmatpush1.msra.mxu0 0.0
      %457 = vmatprep.subr.mxu0 0.0
      %458 = vmatpush1.msra.mxu0 0.0
      %459 = vmatprep.subr.mxu0 0.0
      %460 = vmatpush1.msra.mxu0 0.0
      %461 = vmatprep.mubr.f32.mxu0 0.0
      %462 = vmatmul.mubr.f32.gmra.mrb[0].mxu0 %v278
      %v463 = vpop.f32.mrb[0].mxu0
      %v464 = vadd.f32 %v259, %v463
      %v465 = vpop.f32.mrb[0].mxu0
      %v466 = vadd.f32 %v259, %v465
      %467 = vmatprep.mubr.f32.mxu0 0.0
      %468 = vmatmul.mubr.f32.gmra.mrb[0].mxu0 %v281
      %v469 = vpop.f32.mrb[0].mxu0
      %v470 = vadd.f32 %v264, %v469
      %v471 = vpop.f32.mrb[0].mxu0
      %v472 = vadd.f32 %v264, %v471
      %473 = vmatprep.mubr.f32.mxu0 0.0
      %474 = vmatmul.mubr.f32.gmra.mrb[0].mxu0 %v284
      %v475 = vpop.f32.mrb[0].mxu0
      %v476 = vadd.f32 %v269, %v475
      %v477 = vpop.f32.mrb[0].mxu0
      %v478 = vadd.f32 %v269, %v477
      %479 = vmatprep.mubr.f32.mxu0 0.0
      %480 = vmatmul.mubr.f32.gmra.mrb[0].mxu0 %v287
      %v481 = vpop.f32.mrb[0].mxu0
      %v482 = vadd.f32 %v274, %v481
      %v483 = vpop.f32.mrb[0].mxu0
      %v484 = vadd.f32 %v274, %v483
      %485 = vdwg.mxu0
      %486 = vmatprep.subr.mxu0 %v227
      %487 = vmatpush1.msra.mxu0 %v226
      %488 = vmatprep.subr.mxu0 %v233
      %489 = vmatpush1.msra.mxu0 %v232
      %490 = vmatprep.subr.mxu0 %v239
      %491 = vmatpush1.msra.mxu0 %v238
      %492 = vmatprep.subr.mxu0 %v245
      %493 = vmatpush1.msra.mxu0 %v244
      %494 = vmatprep.subr.mxu0 %v306
      %495 = vmatpush1.msra.mxu0 %v303
      %496 = vmatprep.subr.mxu0 0.0
      %497 = vmatpush1.msra.mxu0 0.0
      %498 = vmatprep.subr.mxu0 0.0
      %499 = vmatpush1.msra.mxu0 0.0
      %500 = vmatprep.subr.mxu0 0.0
      %501 = vmatpush1.msra.mxu0 0.0
      %502 = vmatprep.subr.mxu0 0.0
      %503 = vmatpush1.msra.mxu0 0.0
      %504 = vmatprep.subr.mxu0 0.0
      %505 = vmatpush1.msra.mxu0 0.0
      %506 = vmatprep.subr.mxu0 0.0
      %507 = vmatpush1.msra.mxu0 0.0
      %508 = vmatprep.subr.mxu0 0.0
      %509 = vmatpush1.msra.mxu0 0.0
      %510 = vmatprep.subr.mxu0 0.0
      %511 = vmatpush1.msra.mxu0 0.0
      %512 = vmatprep.subr.mxu0 0.0
      %513 = vmatpush1.msra.mxu0 0.0
      %514 = vmatprep.subr.mxu0 0.0
      %515 = vmatpush1.msra.mxu0 0.0
      %516 = vmatprep.subr.mxu0 0.0
      %517 = vmatpush1.msra.mxu0 0.0
      %518 = vmatprep.subr.mxu0 0.0
      %519 = vmatpush1.msra.mxu0 0.0
      %520 = vmatprep.subr.mxu0 0.0
      %521 = vmatpush1.msra.mxu0 0.0
      %522 = vmatprep.subr.mxu0 0.0
      %523 = vmatpush1.msra.mxu0 0.0
      %524 = vmatprep.subr.mxu0 0.0
      %525 = vmatpush1.msra.mxu0 0.0
      %526 = vmatprep.subr.mxu0 0.0
      %527 = vmatpush1.msra.mxu0 0.0
      %528 = vmatprep.subr.mxu0 0.0
      %529 = vmatpush1.msra.mxu0 0.0
      %530 = vmatprep.subr.mxu0 0.0
      %531 = vmatpush1.msra.mxu0 0.0
      %532 = vmatprep.subr.mxu0 0.0
      %533 = vmatpush1.msra.mxu0 0.0
      %534 = vmatprep.subr.mxu0 0.0
      %535 = vmatpush1.msra.mxu0 0.0
      %536 = vmatprep.subr.mxu0 0.0
      %537 = vmatpush1.msra.mxu0 0.0
      %538 = vmatprep.subr.mxu0 0.0
      %539 = vmatpush1.msra.mxu0 0.0
      %540 = vmatprep.subr.mxu0 0.0
      %541 = vmatpush1.msra.mxu0 0.0
      %542 = vmatprep.subr.mxu0 0.0
      %543 = vmatpush1.msra.mxu0 0.0
      %544 = vmatprep.subr.mxu0 0.0
      %545 = vmatpush1.msra.mxu0 0.0
      %546 = vmatprep.subr.mxu0 0.0
      %547 = vmatpush1.msra.mxu0 0.0
      %548 = vmatprep.subr.mxu0 0.0
      %549 = vmatpush1.msra.mxu0 0.0
      %550 = vmatprep.mubr.f32.mxu0 0.0
      %551 = vmatmul.mubr.f32.gmra.mrb[0].mxu0 %v278
      %v552 = vpop.f32.mrb[0].mxu0
      %v553 = vadd.f32 %v259, %v552
      %v554 = vpop.f32.mrb[0].mxu0
      %v555 = vadd.f32 %v259, %v554
      %556 = vmatprep.mubr.f32.mxu0 0.0
      %557 = vmatmul.mubr.f32.gmra.mrb[0].mxu0 %v281
      %v558 = vpop.f32.mrb[0].mxu0
      %v559 = vadd.f32 %v264, %v558
      %v560 = vpop.f32.mrb[0].mxu0
      %v561 = vadd.f32 %v264, %v560
      %562 = vmatprep.mubr.f32.mxu0 0.0
      %563 = vmatmul.mubr.f32.gmra.mrb[0].mxu0 %v284
      %v564 = vpop.f32.mrb[0].mxu0
      %v565 = vadd.f32 %v269, %v564
      %v566 = vpop.f32.mrb[0].mxu0
      %v567 = vadd.f32 %v269, %v566
      %568 = vmatprep.mubr.f32.mxu0 0.0
      %569 = vmatmul.mubr.f32.gmra.mrb[0].mxu0 %v287
      %v570 = vpop.f32.mrb[0].mxu0
      %v571 = vadd.f32 %v274, %v570
      %v572 = vpop.f32.mrb[0].mxu0
      %v573 = vadd.f32 %v274, %v572
      %574 = vdwg.mxu0
      %v575 = vmax.f32 %v375, 0.0
      %v576 = vmax.f32 %v377, 0.0
      %v577 = vmax.f32 %v464, 0.0
      %v578 = vmax.f32 %v466, 0.0
      %v579 = vmax.f32 %v553, 0.0
      %v580 = vmax.f32 %v555, 0.0
      %v581 = vmax.f32 %v381, 0.0
      %v582 = vmax.f32 %v383, 0.0
      %v583 = vmax.f32 %v470, 0.0
      %v584 = vmax.f32 %v472, 0.0
      %v585 = vmax.f32 %v559, 0.0
      %v586 = vmax.f32 %v561, 0.0
      %v587 = vmax.f32 %v387, 0.0
      %v588 = vmax.f32 %v389, 0.0
      %v589 = vmax.f32 %v476, 0.0
      %v590 = vmax.f32 %v478, 0.0
      %v591 = vmax.f32 %v565, 0.0
      %v592 = vmax.f32 %v567, 0.0
      %v593 = vmax.f32 %v393, 0.0
      %v594 = vmax.f32 %v395, 0.0
      %v595 = vmax.f32 %v482, 0.0
      %v596 = vmax.f32 %v484, 0.0
      %v597 = vmax.f32 %v571, 0.0
      %v598 = vmax.f32 %v573, 0.0
      %s599 = smul.u32 %s23, 128
      %s600 = sld [smem:[#allocation3 + %s599]]
      %p601 = scmp.eq.s32.totalorder %s600, 4294967295
      %s602 = scalar_select %p601, 1.0, 0.0
      %v603 = vadd.f32 %v575, %v576
      %604 = vadd.xlane.f32.xlu0 %v603
      %v605 = vpop.xlane.xlu0 %604
      %v606 = vadd.f32 %v581, %v582
      %607 = vadd.xlane.f32.xlu0 %v606
      %v608 = vpop.xlane.xlu0 %607
      %v609 = vadd.f32 %v587, %v588
      %610 = vadd.xlane.f32.xlu0 %v609
      %v611 = vpop.xlane.xlu0 %610
      %v612 = vadd.f32 %v593, %v594
      %613 = vadd.xlane.f32.xlu0 %v612
      %v614 = vpop.xlane.xlu0 %613
      %v615 = vmul.f32 %v605, 0.00390625
      %v616 = vmul.f32 %v608, 0.00390625
      %v617 = vmul.f32 %v611, 0.00390625
      %v618 = vmul.f32 %v614, 0.00390625
      %s619 = ssub.f32 1.0, %s602
      %v620 = vstv %s619
      %v621 = vmul.f32 %v620, %v575
      %v622 = vmul.f32 %v620, %v576
      %v623 = vmul.f32 %v620, %v581
      %v624 = vmul.f32 %v620, %v582
      %v625 = vmul.f32 %v620, %v587
      %v626 = vmul.f32 %v620, %v588
      %v627 = vmul.f32 %v620, %v593
      %v628 = vmul.f32 %v620, %v594
      %v629 = vstv %s602
      %v630 = vsub.f32 %v621, %v629
      %v631 = vsub.f32 %v622, %v629
      %v632 = vsub.f32 %v623, %v629
      %v633 = vsub.f32 %v624, %v629
      %v634 = vsub.f32 %v625, %v629
      %v635 = vsub.f32 %v626, %v629
      %v636 = vsub.f32 %v627, %v629
      %v637 = vsub.f32 %v628, %v629
      %v638 = vmul.f32 %v620, %v615
      %v639 = vmul.f32 %v620, %v616
      %v640 = vmul.f32 %v620, %v617
      %v641 = vmul.f32 %v620, %v618
      %v642 = vsub.f32 %v638, %v629
      %v643 = vsub.f32 %v639, %v629
      %v644 = vsub.f32 %v640, %v629
      %v645 = vsub.f32 %v641, %v629
      %s646 = sadd.s32 %s599, 1
      %s647 = sld [smem:[#allocation3 + %s646]]
      %p648 = scmp.eq.s32.totalorder %s647, 4294967295
      %s649 = scalar_select %p648, 1.0, 0.0
      %v650 = vadd.f32 %v577, %v578
      %651 = vadd.xlane.f32.xlu0 %v650
      %v652 = vpop.xlane.xlu0 %651
      %v653 = vadd.f32 %v583, %v584
      %654 = vadd.xlane.f32.xlu0 %v653
      %v655 = vpop.xlane.xlu0 %654
      %v656 = vadd.f32 %v589, %v590
      %657 = vadd.xlane.f32.xlu0 %v656
      %v658 = vpop.xlane.xlu0 %657
      %v659 = vadd.f32 %v595, %v596
      %660 = vadd.xlane.f32.xlu0 %v659
      %v661 = vpop.xlane.xlu0 %660
      %v662 = vmul.f32 %v652, 0.00390625
      %v663 = vmul.f32 %v655, 0.00390625
      %v664 = vmul.f32 %v658, 0.00390625
      %v665 = vmul.f32 %v661, 0.00390625
      %s666 = ssub.f32 1.0, %s649
      %v667 = vstv %s666
      %v668 = vmul.f32 %v667, %v577
      %v669 = vmul.f32 %v667, %v578
      %v670 = vmul.f32 %v667, %v583
      %v671 = vmul.f32 %v667, %v584
      %v672 = vmul.f32 %v667, %v589
      %v673 = vmul.f32 %v667, %v590
      %v674 = vmul.f32 %v667, %v595
      %v675 = vmul.f32 %v667, %v596
      %v676 = vstv %s649
      %v677 = vsub.f32 %v668, %v676
      %v678 = vsub.f32 %v669, %v676
      %v679 = vsub.f32 %v670, %v676
      %v680 = vsub.f32 %v671, %v676
      %v681 = vsub.f32 %v672, %v676
      %v682 = vsub.f32 %v673, %v676
      %v683 = vsub.f32 %v674, %v676
      %v684 = vsub.f32 %v675, %v676
      %v685 = vmul.f32 %v667, %v662
      %v686 = vmul.f32 %v667, %v663
      %v687 = vmul.f32 %v667, %v664
      %v688 = vmul.f32 %v667, %v665
      %v689 = vsub.f32 %v685, %v676
      %v690 = vsub.f32 %v686, %v676
      %v691 = vsub.f32 %v687, %v676
      %v692 = vsub.f32 %v688, %v676
      %v693 = vmax.f32 %v630, %v677
      %v694 = vmax.f32 %v631, %v678
      %v695 = vmax.f32 %v632, %v679
      %v696 = vmax.f32 %v633, %v680
      %v697 = vmax.f32 %v634, %v681
      %v698 = vmax.f32 %v635, %v682
      %v699 = vmax.f32 %v636, %v683
      %v700 = vmax.f32 %v637, %v684
      %v701 = vmax.f32 %v642, %v689
      %v702 = vmax.f32 %v643, %v690
      %v703 = vmax.f32 %v644, %v691
      %v704 = vmax.f32 %v645, %v692
      %s705 = sadd.s32 %s599, 2
      %s706 = sld [smem:[#allocation3 + %s705]]
      %p707 = scmp.eq.s32.totalorder %s706, 4294967295
      %s708 = scalar_select %p707, 1.0, 0.0
      %v709 = vadd.f32 %v579, %v580
      %710 = vadd.xlane.f32.xlu0 %v709
      %v711 = vpop.xlane.xlu0 %710
      %v712 = vadd.f32 %v585, %v586
      %713 = vadd.xlane.f32.xlu0 %v712
      %v714 = vpop.xlane.xlu0 %713
      %v715 = vadd.f32 %v591, %v592
      %716 = vadd.xlane.f32.xlu0 %v715
      %v717 = vpop.xlane.xlu0 %716
      %v718 = vadd.f32 %v597, %v598
      %719 = vadd.xlane.f32.xlu0 %v718
      %v720 = vpop.xlane.xlu0 %719
      %v721 = vmul.f32 %v711, 0.00390625
      %v722 = vmul.f32 %v714, 0.00390625
      %v723 = vmul.f32 %v717, 0.00390625
      %v724 = vmul.f32 %v720, 0.00390625
      %s725 = ssub.f32 1.0, %s708
      %v726 = vstv %s725
      %v727 = vmul.f32 %v726, %v579
      %v728 = vmul.f32 %v726, %v580
      %v729 = vmul.f32 %v726, %v585
      %v730 = vmul.f32 %v726, %v586
      %v731 = vmul.f32 %v726, %v591
      %v732 = vmul.f32 %v726, %v592
      %v733 = vmul.f32 %v726, %v597
      %v734 = vmul.f32 %v726, %v598
      %v735 = vstv %s708
      %v736 = vsub.f32 %v727, %v735
      %v737 = vsub.f32 %v728, %v735
      %v738 = vsub.f32 %v729, %v735
      %v739 = vsub.f32 %v730, %v735
      %v740 = vsub.f32 %v731, %v735
      %v741 = vsub.f32 %v732, %v735
      %v742 = vsub.f32 %v733, %v735
      %v743 = vsub.f32 %v734, %v735
      %v744 = vmul.f32 %v726, %v721
      %v745 = vmul.f32 %v726, %v722
      %v746 = vmul.f32 %v726, %v723
      %v747 = vmul.f32 %v726, %v724
      %v748 = vsub.f32 %v744, %v735
      %v749 = vsub.f32 %v745, %v735
      %v750 = vsub.f32 %v746, %v735
      %v751 = vsub.f32 %v747, %v735
      %v752 = vmax.f32 %v693, %v736
      %v753 = vmax.f32 %v694, %v737
      %v754 = vmax.f32 %v695, %v738
      %v755 = vmax.f32 %v696, %v739
      %v756 = vmax.f32 %v697, %v740
      %v757 = vmax.f32 %v698, %v741
      %v758 = vmax.f32 %v699, %v742
      %v759 = vmax.f32 %v700, %v743
      %v760 = vmax.f32 %v701, %v748
      %v761 = vmax.f32 %v702, %v749
      %v762 = vmax.f32 %v703, %v750
      %v763 = vmax.f32 %v704, %v751
      %vm764 = vcmask 7168
      %765 = vst.msk [vmem:[%s212] sm:$0xff] %vm764, %v760
      %766 = vst.msk [vmem:[%s212 + $0x8] sm:$0xff] %vm764, %v761
      %767 = vst.msk [vmem:[%s212 + $0x10] sm:$0xff] %vm764, %v762
      %768 = vst.msk [vmem:[%s212 + $0x18] sm:$0xff] %vm764, %v763
      %769 = vst [vmem:[%s217] sm:$0xff] %v752
      %770 = vst [vmem:[%s217 + $0x8] sm:$0xff] %v753
      %771 = vst [vmem:[%s217 + $0x10] sm:$0xff] %v754
      %772 = vst [vmem:[%s217 + $0x18] sm:$0xff] %v755
      %773 = vst [vmem:[%s217 + $0x20] sm:$0xff] %v756
      %774 = vst [vmem:[%s217 + $0x28] sm:$0xff] %v757
      %775 = vst [vmem:[%s217 + $0x30] sm:$0xff] %v758
      %776 = vst [vmem:[%s217 + $0x38] sm:$0xff] %v759
      %p777 = scmp.lt.s32.totalorder %s23, 1
      %s778 = scalar_select %p777, %s23, 1
      %s779 = smul.addr %s778, 4
      %s780 = smul.addr %s779, 8
      %s781 = scalar_lea.vmem %s4, %s780
      %p782 = scmp.lt.s32.totalorder %s23, 1
      %s783 = scalar_select %p782, %s23, 1
      %s784 = smul.addr %s783, 8
      %s785 = smul.addr %s784, 8
      %s786 = scalar_lea.vmem %s5, %s785
      // Predicated region
      $region33: #{mvcnn_forward.1} parent=31 // pred_check
        %p787 = pneg %p109
      $region34: #{mvcnn_forward.1} parent=31 // pred_check_branch
        %789 = sbr.rel (%p787) target = $region36
      $region35: #{mvcnn_forward.1} parent=31 // pred_region
        _
      $region36: #{mvcnn_forward.1} parent=31 // pred_fallthru
        _
      // Predicated region
      $region37: #{mvcnn_forward.1} parent=31 // pred_check
        %p790 = pneg %p135
      $region38: #{mvcnn_forward.1} parent=31 // pred_check_branch
        %792 = sbr.rel (%p790) target = $region40
      $region39: #{mvcnn_forward.1} parent=31 // pred_region
        _
      $region40: #{mvcnn_forward.1} parent=31 // pred_fallthru
        _
    $region32: #{mvcnn_forward.1} parent=5 // pred_fallthru
      _
    %p793 = scmp.le.s32.totalorder 2, %s18
    // Predicated region
    $region41: #{mvcnn_forward.1} parent=5 // pred_check
      %p794 = pneg %p793
    $region42: #{mvcnn_forward.1} parent=5 // pred_check_branch
      %796 = sbr.rel (%p794) target = $region44
    $region43: #{mvcnn_forward.1} parent=5 // pred_region
      %s797 = ssub.s32 %s18, 2
      // Predicated region
      $region45: #{mvcnn_forward.1} parent=43 // pred_check
        %p798 = pneg %p115
      $region46: #{mvcnn_forward.1} parent=43 // pred_check_branch
        %800 = sbr.rel (%p798) target = $region48
      $region47: #{mvcnn_forward.1} parent=43 // pred_region
        %p801 = scmp.lt.s32.totalorder %s24, 1
        %s802 = scalar_select %p801, %s24, 1
        %s803 = smul.addr %s802, 4
        %s804 = smul.addr %s803, 8
        %s805 = scalar_lea.vmem %s4, %s804
      $region48: #{mvcnn_forward.1} parent=43 // pred_fallthru
        _
      // Predicated region
      $region49: #{mvcnn_forward.1} parent=43 // pred_check
        %p806 = pneg %p141
      $region50: #{mvcnn_forward.1} parent=43 // pred_check_branch
        %808 = sbr.rel (%p806) target = $region52
      $region51: #{mvcnn_forward.1} parent=43 // pred_region
        %p809 = scmp.lt.s32.totalorder %s24, 1
        %s810 = scalar_select %p809, %s24, 1
        %s811 = smul.addr %s810, 8
        %s812 = smul.addr %s811, 8
        %s813 = scalar_lea.vmem %s5, %s812
      $region52: #{mvcnn_forward.1} parent=43 // pred_fallthru
        _
    $region44: #{mvcnn_forward.1} parent=5 // pred_fallthru
      _
  $region6: #{mvcnn_forward.1} parent=0 // loop_footer
    %s22 = sadd.s32 1, %s18
  $region7: #{mvcnn_forward.1} parent=0 // loop_footer_branch
    %17 = sbr.rel target = $region3
  $region8: #{mvcnn_forward.1} parent=0 // loop_exit
    _

</llo_original>
